<compile_context>
chip_gen: v5e
topology: v5e:2x2
jax: 0.10.0
libtpu: 0.0.40
codegen_flags: <defaults>
</compile_context>

<pallas_src>
import jax
import jax.numpy as jnp
from jax.experimental import pallas as pl
from jax.experimental.pallas import tpu as pltpu

INPUT_SIZE = 30   # classic credit-card-fraud feature count (Time, V1..V28, Amount)
H1, H2, OUT = 64, 32, 1
BN_EPS = 1e-5
BLOCK_B = 2048    # batch tile (lane axis of intermediates/output); multiple of 256


def _round_up(n, m):
    return -(-n // m) * m


def _pick_tile(batch, block_b):
    """Pick the batch tile: large enough to amortize per-grid-step overhead, never
    (much) larger than the batch needs, and split into >= 2 grid steps on mid-size
    batches so v7x's two TensorCores both get work via dimension_semantics."""
    block_b = _round_up(max(block_b, 256), 256)
    bb = min(block_b, max(256, _round_up(batch, 256)))
    if 512 < batch <= bb:
        bb = max(256, _round_up(-(-batch // 2), 256))
    return bb


def fraud_mlp_kernel(x_ref, w1_ref, b1_ref, w2_ref, b2_ref, w3_ref, b3_ref, o_ref):
    """One batch tile.  x_ref is (TB, IN) batch-major straight from HBM; all
    intermediates are feature-major (features on sublanes, batch on lanes) so the
    output store (1, TB) is lane-dense."""
    x = x_ref[...]                                                   # (TB, IN)

    # fc1 (+ folded bn1) -> relu : contract feature dims  (H1, IN) x (TB, IN) -> (H1, TB)
    h = jax.lax.dot_general(w1_ref[...], x, (((1,), (1,)), ((), ())),
                            preferred_element_type=jnp.float32)
    h = jnp.maximum(h + b1_ref[...], 0.0)

    # fc2 (+ folded bn2) -> relu : (H2, H1) @ (H1, TB) -> (H2, TB)
    h = jnp.dot(w2_ref[...], h, preferred_element_type=jnp.float32)
    h = jnp.maximum(h + b2_ref[...], 0.0)

    # fc3: single output row -> VPU broadcast-mul + XLU sublane reduction (skip M=1 MXU matmul)
    z = jnp.sum(w3_ref[...] * h, axis=0, keepdims=True) + b3_ref[...]    # (1, TB)

    # sigmoid (exp on EUP; divide only on OUT x TB elements)
    o_ref[...] = 1.0 / (1.0 + jnp.exp(-z))


def fraud_mlp_forward(x, params, *, block_b=BLOCK_B):
    """x: (B, INPUT_SIZE) float32.  params: dict in native PyTorch layout (see init_params).

    Returns (B, 1) float32 probabilities (eval-mode forward of the PyTorch module).
    """
    B = x.shape[0]

    # ---- Fold BatchNorm (eval mode) into the linear layers (wrapper-side, f32) ----
    s1 = params["g1"] * jax.lax.rsqrt(params["v1"] + BN_EPS)              # (H1,)
    w1f = params["w1"] * s1[:, None]                                      # (H1, IN)
    b1f = ((params["b1"] - params["m1"]) * s1 + params["bt1"])[:, None]   # (H1, 1)

    s2 = params["g2"] * jax.lax.rsqrt(params["v2"] + BN_EPS)              # (H2,)
    w2f = params["w2"] * s2[:, None]                                      # (H2, H1)
    b2f = ((params["b2"] - params["m2"]) * s2 + params["bt2"])[:, None]   # (H2, 1)

    w3c = params["w3"].T                                                  # (H2, OUT) column
    b3 = params["b3"][:, None]                                            # (OUT, 1)

    bb = _pick_tile(B, block_b)
    n_tiles = pl.cdiv(B, bb)

    cost = pl.CostEstimate(
        flops=2 * B * (INPUT_SIZE * H1 + H1 * H2 + H2 * OUT),
        transcendentals=B * OUT,
        bytes_accessed=4 * (B * INPUT_SIZE + B * OUT
                            + H1 * INPUT_SIZE + H1 + H2 * H1 + H2 + OUT * H2 + OUT),
    )

    const = lambda i: (0, 0)   # resident-in-VMEM params (constant index_map => fetched once)
    out = pl.pallas_call(
        fraud_mlp_kernel,
        out_shape=jax.ShapeDtypeStruct((OUT, B), jnp.float32),
        grid=(n_tiles,),
        in_specs=[
            pl.BlockSpec((bb, INPUT_SIZE), lambda i: (i, 0)),     # streamed x tile (no wrapper transpose/pad)
            pl.BlockSpec((H1, INPUT_SIZE), const),
            pl.BlockSpec((H1, 1), const),
            pl.BlockSpec((H2, H1), const),
            pl.BlockSpec((H2, 1), const),
            pl.BlockSpec((H2, OUT), const),
            pl.BlockSpec((OUT, 1), const),
        ],
        out_specs=pl.BlockSpec((OUT, bb), lambda i: (0, i)),      # lane-dense output
        compiler_params=pltpu.CompilerParams(
            dimension_semantics=("parallel",),
        ),
        cost_estimate=cost,
    )(x, w1f, b1f, w2f, b2f, w3c, b3)

    return out.T                                                   # (B, 1)


def init_params(key):
    """Parameters in native PyTorch layout: Linear weight (out, in), 1-D vectors."""
    ks = jax.random.split(key, 14)
    p = {}
    p["w1"] = jax.random.normal(ks[0], (H1, INPUT_SIZE), jnp.float32) * 0.1
    p["b1"] = jax.random.normal(ks[1], (H1,), jnp.float32) * 0.01
    p["w2"] = jax.random.normal(ks[2], (H2, H1), jnp.float32) * 0.1
    p["b2"] = jax.random.normal(ks[3], (H2,), jnp.float32) * 0.01
    p["w3"] = jax.random.normal(ks[4], (OUT, H2), jnp.float32) * 0.1
    p["b3"] = jax.random.normal(ks[5], (OUT,), jnp.float32) * 0.01
    # BatchNorm1d params + running stats (eval-mode)
    p["g1"] = 1.0 + 0.1 * jax.random.normal(ks[6], (H1,), jnp.float32)
    p["bt1"] = 0.1 * jax.random.normal(ks[7], (H1,), jnp.float32)
    p["m1"] = 0.05 * jax.random.normal(ks[8], (H1,), jnp.float32)
    p["v1"] = 1.0 + 0.1 * jax.random.uniform(ks[9], (H1,), jnp.float32)
    p["g2"] = 1.0 + 0.1 * jax.random.normal(ks[10], (H2,), jnp.float32)
    p["bt2"] = 0.1 * jax.random.normal(ks[11], (H2,), jnp.float32)
    p["m2"] = 0.05 * jax.random.normal(ks[12], (H2,), jnp.float32)
    p["v2"] = 1.0 + 0.1 * jax.random.uniform(ks[13], (H2,), jnp.float32)
    return p


def reference_forward(x, p):
    """Pure-JAX reference reproducing the PyTorch eval-mode forward (unfolded BN)."""
    h = x @ p["w1"].T + p["b1"]
    h = (h - p["m1"]) * jax.lax.rsqrt(p["v1"] + BN_EPS) * p["g1"] + p["bt1"]
    h = jnp.maximum(h, 0.0)
    h = h @ p["w2"].T + p["b2"]
    h = (h - p["m2"]) * jax.lax.rsqrt(p["v2"] + BN_EPS) * p["g2"] + p["bt2"]
    h = jnp.maximum(h, 0.0)
    z = h @ p["w3"].T + p["b3"]
    return 1.0 / (1.0 + jnp.exp(-z))


if __name__ == "__main__":
    key = jax.random.PRNGKey(0)
    k_params, k_x = jax.random.split(key)
    params = init_params(k_params)

    # Small batch (single partial tile).
    B = 8
    x = jax.random.normal(k_x, (B, INPUT_SIZE), jnp.float32)
    out = jax.block_until_ready(fraud_mlp_forward(x, params))
    ref = reference_forward(x, params)
    assert out.shape == (B, OUT), out.shape
    assert jnp.allclose(out, ref, atol=1e-5, rtol=1e-4)

    # Multi-tile grid with a ragged (non-tile-aligned) tail, kept small via an explicit tile.
    B2 = 2 * 256 + 17
    x2 = jax.random.normal(jax.random.PRNGKey(1), (B2, INPUT_SIZE), jnp.float32)
    out2 = jax.block_until_ready(fraud_mlp_forward(x2, params, block_b=256))
    ref2 = reference_forward(x2, params)
    assert out2.shape == (B2, OUT), out2.shape
    assert jnp.allclose(out2, ref2, atol=1e-5, rtol=1e-4)

    print("KERNEL_OK")
</pallas_src>

<mosaic_0001>
module attributes {stable_mosaic.version = 11 : i64} {
  func.func @fraud_mlp_kernel(%arg0: i32, %arg1: memref<256x30xf32, #tpu.memory_space<vmem>>, %arg2: memref<64x30xf32, #tpu.memory_space<vmem>>, %arg3: memref<64x1xf32, #tpu.memory_space<vmem>>, %arg4: memref<32x64xf32, #tpu.memory_space<vmem>>, %arg5: memref<32x1xf32, #tpu.memory_space<vmem>>, %arg6: memref<32x1xf32, #tpu.memory_space<vmem>>, %arg7: memref<1x1xf32, #tpu.memory_space<vmem>>, %arg8: memref<1x256xf32, #tpu.memory_space<vmem>>) attributes {dimension_semantics = [#tpu.dimension_semantics<parallel>], iteration_bounds = array<i64: 1>, scalar_prefetch = 0 : i64, scratch_operands = 0 : i64, tpu.core_type = #tpu.core_type<tc>, window_params = [{transform_indices = @transform_0, window_bounds = array<i64: 256, 30>}, {pipeline_mode = #tpu.pipeline_mode<synchronous>, transform_indices = @transform_1, window_bounds = array<i64: 64, 30>}, {pipeline_mode = #tpu.pipeline_mode<synchronous>, transform_indices = @transform_2, window_bounds = array<i64: 64, 1>}, {pipeline_mode = #tpu.pipeline_mode<synchronous>, transform_indices = @transform_3, window_bounds = array<i64: 32, 64>}, {pipeline_mode = #tpu.pipeline_mode<synchronous>, transform_indices = @transform_4, window_bounds = array<i64: 32, 1>}, {pipeline_mode = #tpu.pipeline_mode<synchronous>, transform_indices = @transform_5, window_bounds = array<i64: 32, 1>}, {pipeline_mode = #tpu.pipeline_mode<synchronous>, transform_indices = @transform_6, window_bounds = array<i64: 1, 1>}, {transform_indices = @transform_7, window_bounds = array<i64: 1, 256>}]} {
    %c0 = arith.constant 0 : index
    %c0_0 = arith.constant 0 : index
    %0 = vector.load %arg1[%c0, %c0_0] : memref<256x30xf32, #tpu.memory_space<vmem>>, vector<256x30xf32>
    %c0_1 = arith.constant 0 : index
    %c0_2 = arith.constant 0 : index
    %1 = vector.load %arg2[%c0_1, %c0_2] : memref<64x30xf32, #tpu.memory_space<vmem>>, vector<64x30xf32>
    %cst = arith.constant dense<0.000000e+00> : vector<64x256xf32>
    %2 = tpu.matmul %1, %0, %cst {dimension_numbers = #tpu.dot_dimension_numbers<[1], [1], [0], [0], [0, 0, 1, 0], [], []>} : vector<64x30xf32>, vector<256x30xf32>, vector<64x256xf32> -> vector<64x256xf32>
    %c0_3 = arith.constant 0 : index
    %c0_4 = arith.constant 0 : index
    %3 = vector.load %arg3[%c0_3, %c0_4] : memref<64x1xf32, #tpu.memory_space<vmem>>, vector<64x1xf32>
    %4 = vector.broadcast %3 : vector<64x1xf32> to vector<64x256xf32>
    %5 = arith.addf %2, %4 : vector<64x256xf32>
    %cst_5 = arith.constant 0.000000e+00 : f32
    %6 = vector.broadcast %cst_5 : f32 to vector<64x256xf32>
    %7 = arith.maximumf %5, %6 : vector<64x256xf32>
    %c0_6 = arith.constant 0 : index
    %c0_7 = arith.constant 0 : index
    %8 = vector.load %arg4[%c0_6, %c0_7] : memref<32x64xf32, #tpu.memory_space<vmem>>, vector<32x64xf32>
    %cst_8 = arith.constant dense<0.000000e+00> : vector<32x256xf32>
    %9 = tpu.matmul %8, %7, %cst_8 {dimension_numbers = #tpu.dot_dimension_numbers<[1], [0], [0], [1], [0, 0, 1, 1], [], []>} : vector<32x64xf32>, vector<64x256xf32>, vector<32x256xf32> -> vector<32x256xf32>
    %c0_9 = arith.constant 0 : index
    %c0_10 = arith.constant 0 : index
    %10 = vector.load %arg5[%c0_9, %c0_10] : memref<32x1xf32, #tpu.memory_space<vmem>>, vector<32x1xf32>
    %11 = vector.broadcast %10 : vector<32x1xf32> to vector<32x256xf32>
    %12 = arith.addf %9, %11 : vector<32x256xf32>
    %cst_11 = arith.constant 0.000000e+00 : f32
    %13 = vector.broadcast %cst_11 : f32 to vector<32x256xf32>
    %14 = arith.maximumf %12, %13 : vector<32x256xf32>
    %c0_12 = arith.constant 0 : index
    %c0_13 = arith.constant 0 : index
    %15 = vector.load %arg6[%c0_12, %c0_13] : memref<32x1xf32, #tpu.memory_space<vmem>>, vector<32x1xf32>
    %16 = vector.broadcast %15 : vector<32x1xf32> to vector<32x256xf32>
    %17 = arith.mulf %16, %14 : vector<32x256xf32>
    %cst_14 = arith.constant dense<0.000000e+00> : vector<256xf32>
    %18 = vector.multi_reduction <add>, %17, %cst_14 [0] : vector<32x256xf32> to vector<256xf32>
    %19 = vector.shape_cast %18 : vector<256xf32> to vector<1x256xf32>
    %c0_15 = arith.constant 0 : index
    %c0_16 = arith.constant 0 : index
    %20 = vector.load %arg7[%c0_15, %c0_16] : memref<1x1xf32, #tpu.memory_space<vmem>>, vector<1x1xf32>
    %21 = vector.broadcast %20 : vector<1x1xf32> to vector<1x256xf32>
    %22 = arith.addf %19, %21 : vector<1x256xf32>
    %cst_17 = arith.constant 0.000000e+00 : f32
    %23 = vector.broadcast %cst_17 : f32 to vector<1x256xf32>
    %24 = arith.subf %23, %22 : vector<1x256xf32>
    %25 = math.exp %24 : vector<1x256xf32>
    %cst_18 = arith.constant 1.000000e+00 : f32
    %26 = vector.broadcast %cst_18 : f32 to vector<1x256xf32>
    %27 = arith.addf %26, %25 : vector<1x256xf32>
    %cst_19 = arith.constant 1.000000e+00 : f32
    %28 = vector.broadcast %cst_19 : f32 to vector<1x256xf32>
    %29 = arith.divf %28, %27 : vector<1x256xf32>
    %c0_20 = arith.constant 0 : index
    %c0_21 = arith.constant 0 : index
    %30 = vector.load %arg8[%c0_20, %c0_21] : memref<1x256xf32, #tpu.memory_space<vmem>>, vector<1x256xf32>
    tpu.vector_store %arg8[%c0_20, %c0_21], %29 {strides = array<i32>} : memref<1x256xf32, #tpu.memory_space<vmem>>, vector<1x256xf32>,
    return
  }
  func.func @transform_0(%arg0: i32) -> (i32, i32) {
    %c0_i32 = arith.constant 0 : i32
    %c0_i32_0 = arith.constant 0 : i32
    return %arg0, %c0_i32 : i32, i32
  }
  func.func @transform_1(%arg0: i32) -> (i32, i32) {
    %c0_i32 = arith.constant 0 : i32
    %c0_i32_0 = arith.constant 0 : i32
    %c0_i32_1 = arith.constant 0 : i32
    return %c0_i32, %c0_i32_0 : i32, i32
  }
  func.func @transform_2(%arg0: i32) -> (i32, i32) {
    %c0_i32 = arith.constant 0 : i32
    %c0_i32_0 = arith.constant 0 : i32
    %c0_i32_1 = arith.constant 0 : i32
    return %c0_i32, %c0_i32_0 : i32, i32
  }
  func.func @transform_3(%arg0: i32) -> (i32, i32) {
    %c0_i32 = arith.constant 0 : i32
    %c0_i32_0 = arith.constant 0 : i32
    %c0_i32_1 = arith.constant 0 : i32
    return %c0_i32, %c0_i32_0 : i32, i32
  }
  func.func @transform_4(%arg0: i32) -> (i32, i32) {
    %c0_i32 = arith.constant 0 : i32
    %c0_i32_0 = arith.constant 0 : i32
    %c0_i32_1 = arith.constant 0 : i32
    return %c0_i32, %c0_i32_0 : i32, i32
  }
  func.func @transform_5(%arg0: i32) -> (i32, i32) {
    %c0_i32 = arith.constant 0 : i32
    %c0_i32_0 = arith.constant 0 : i32
    %c0_i32_1 = arith.constant 0 : i32
    return %c0_i32, %c0_i32_0 : i32, i32
  }
  func.func @transform_6(%arg0: i32) -> (i32, i32) {
    %c0_i32 = arith.constant 0 : i32
    %c0_i32_0 = arith.constant 0 : i32
    %c0_i32_1 = arith.constant 0 : i32
    return %c0_i32, %c0_i32_0 : i32, i32
  }
  func.func @transform_7(%arg0: i32) -> (i32, i32) {
    %c0_i32 = arith.constant 0 : i32
    %c0_i32_0 = arith.constant 0 : i32
    return %c0_i32, %arg0 : i32, i32
  }
}

</mosaic_0001>

<llo_original>
// kernel: tpu_custom_call.1
$region0: #{tpu_custom_call.1}
  #allocation0 [shape = 'u32[]', space=smem, size = 0x4, offset = 0x4, fixed_abs, tag = 'smem constant byte address 0x4 - core index']
  #allocation1 [shape = 'u32[72,128]{1,0:T(1,128)}', space=vmem, size = 0x9000, scoped, tag = 'internal scratch']
  #allocation2 [shape = 'f32[1,1]{1,0:T(1,128)S(1)}', space=vmem, size = 0x200, scoped, tag = 'scoped memory for tpu_custom_call.1']
  %s0 = inlined_call_operand.vmem [shape: f32[8,30], index: 0, kind: input, shape index: {}]
  %s1 = inlined_call_operand.vmem [shape: f32[64,30], index: 1, kind: input, shape index: {}]
  %s2 = inlined_call_operand.vmem [shape: f32[64,1], index: 2, kind: input, shape index: {}]
  %s3 = inlined_call_operand.vmem [shape: f32[32,64], index: 3, kind: input, shape index: {}]
  %s4 = inlined_call_operand.vmem [shape: f32[32,1], index: 4, kind: input, shape index: {}]
  %s5 = inlined_call_operand.vmem [shape: f32[32,1], index: 5, kind: input, shape index: {}]
  %s6 = inlined_call_operand.<no memory space> [shape: f32[1,1], index: 6, kind: input, shape index: {}]
  %s7 = inlined_call_operand.hbm [shape: f32[1,8], index: 7, kind: output, shape index: {}]
  %s8 = sld [smem:[#allocation0]]
  $region38: #{tpu_custom_call.1} parent=0
    _
  %s10 = ssub.s32 1, %s8
  %s11 = scalar_select 0, %s10, %s8
  %v12 = vstv %s6
  %13 = vst [vmem:[#allocation2] sm:$0x1] %v12
  $region1: #{tpu_custom_call.1} parent=0
    #allocation3 [shape = 'u8[1024]{0}', space=vmem, size = 0x400, scoped, tag = 'output window, operand 0, single buffered']
    #allocation4 [shape = 's32[1]{0}', space=sflag, size = 0x4, scoped, tag = 'scoped memory for tpu_custom_call.1']
    %14 = vsyncpa [#allocation4], 0
    // Predicated region
    $region2: #{tpu_custom_call.1} parent=1 // pred_check
      _
    $region3: #{tpu_custom_call.1} parent=1 // pred_check_branch
      %16 = sbr.rel (0) target = $region5
    $region4: #{tpu_custom_call.1} parent=1 // pred_region
      _
    $region5: #{tpu_custom_call.1} parent=1 // pred_fallthru
      _
    // Predicated region
    $region6: #{tpu_custom_call.1} parent=1 // pred_check
      _
    $region7: #{tpu_custom_call.1} parent=1 // pred_check_branch
      %18 = sbr.rel (0) target = $region9
    $region8: #{tpu_custom_call.1} parent=1 // pred_region
      _
    $region9: #{tpu_custom_call.1} parent=1 // pred_fallthru
      _
    // Predicated region
    $region10: #{tpu_custom_call.1} parent=1 // pred_check
      _
    $region11: #{tpu_custom_call.1} parent=1 // pred_check_branch
      %20 = sbr.rel (0) target = $region13
    $region12: #{tpu_custom_call.1} parent=1 // pred_region
      _
    $region13: #{tpu_custom_call.1} parent=1 // pred_fallthru
      _
    // Predicated region
    $region14: #{tpu_custom_call.1} parent=1 // pred_check
      _
    $region15: #{tpu_custom_call.1} parent=1 // pred_check_branch
      %22 = sbr.rel (0) target = $region17
    $region16: #{tpu_custom_call.1} parent=1 // pred_region
      _
    $region17: #{tpu_custom_call.1} parent=1 // pred_fallthru
      _
    // Predicated region
    $region18: #{tpu_custom_call.1} parent=1 // pred_check
      _
    $region19: #{tpu_custom_call.1} parent=1 // pred_check_branch
      %24 = sbr.rel (0) target = $region21
    $region20: #{tpu_custom_call.1} parent=1 // pred_region
      _
    $region21: #{tpu_custom_call.1} parent=1 // pred_fallthru
      _
    // Predicated region
    $region22: #{tpu_custom_call.1} parent=1 // pred_check
      _
    $region23: #{tpu_custom_call.1} parent=1 // pred_check_branch
      %26 = sbr.rel (0) target = $region25
    $region24: #{tpu_custom_call.1} parent=1 // pred_region
      _
    $region25: #{tpu_custom_call.1} parent=1 // pred_fallthru
      _
    // Predicated region
    $region26: #{tpu_custom_call.1} parent=1 // pred_check
      _
    $region27: #{tpu_custom_call.1} parent=1 // pred_check_branch
      %28 = sbr.rel (0) target = $region29
    $region28: #{tpu_custom_call.1} parent=1 // pred_region
      _
    $region29: #{tpu_custom_call.1} parent=1 // pred_fallthru
      _
    %v29 = vld [vmem:[%s0] sm:$0xff]
    %v30 = vld [vmem:[%s0 + $0x8] sm:$0xff]
    %v31 = vld [vmem:[%s0 + $0x10] sm:$0xff]
    %v32 = vld [vmem:[%s0 + $0x18] sm:$0xff]
    %v33 = vld [vmem:[%s0 + $0x20] sm:$0xff]
    %v34 = vld [vmem:[%s0 + $0x28] sm:$0xff]
    %v35 = vld [vmem:[%s0 + $0x30] sm:$0xff]
    %v36 = vld [vmem:[%s0 + $0x38] sm:$0xff]
    %v37 = vld [vmem:[%s0 + $0x40] sm:$0xff]
    %v38 = vld [vmem:[%s0 + $0x48] sm:$0xff]
    %v39 = vld [vmem:[%s0 + $0x50] sm:$0xff]
    %v40 = vld [vmem:[%s0 + $0x58] sm:$0xff]
    %v41 = vld [vmem:[%s0 + $0x60] sm:$0xff]
    %v42 = vld [vmem:[%s0 + $0x68] sm:$0xff]
    %v43 = vld [vmem:[%s0 + $0x70] sm:$0xff]
    %v44 = vld [vmem:[%s0 + $0x78] sm:$0xff]
    %v45 = vld [vmem:[%s0 + $0x80] sm:$0xff]
    %v46 = vld [vmem:[%s0 + $0x88] sm:$0xff]
    %v47 = vld [vmem:[%s0 + $0x90] sm:$0xff]
    %v48 = vld [vmem:[%s0 + $0x98] sm:$0xff]
    %v49 = vld [vmem:[%s0 + $0xa0] sm:$0xff]
    %v50 = vld [vmem:[%s0 + $0xa8] sm:$0xff]
    %v51 = vld [vmem:[%s0 + $0xb0] sm:$0xff]
    %v52 = vld [vmem:[%s0 + $0xb8] sm:$0xff]
    %v53 = vld [vmem:[%s0 + $0xc0] sm:$0xff]
    %v54 = vld [vmem:[%s0 + $0xc8] sm:$0xff]
    %v55 = vld [vmem:[%s0 + $0xd0] sm:$0xff]
    %v56 = vld [vmem:[%s0 + $0xd8] sm:$0xff]
    %v57 = vld [vmem:[%s0 + $0xe0] sm:$0xff]
    %v58 = vld [vmem:[%s0 + $0xe8] sm:$0xff]
    %v59 = vld [vmem:[%s0 + $0xf0] sm:$0xff]
    %v60 = vld [vmem:[%s0 + $0xf8] sm:$0xff]
    %v61 = vld [vmem:[%s1] sm:$0xff]
    %v62 = vld [vmem:[%s1 + $0x8] sm:$0xff]
    %v63 = vld [vmem:[%s1 + $0x10] sm:$0xff]
    %v64 = vld [vmem:[%s1 + $0x18] sm:$0xff]
    %v65 = vld [vmem:[%s1 + $0x20] sm:$0xff]
    %v66 = vld [vmem:[%s1 + $0x28] sm:$0xff]
    %v67 = vld [vmem:[%s1 + $0x30] sm:$0xff]
    %v68 = vld [vmem:[%s1 + $0x38] sm:$0xff]
    %v69 = vld [vmem:[%s2] sm:$0xff]
    %v70 = vld [vmem:[%s2 + $0x8] sm:$0xff]
    %v71 = vld [vmem:[%s2 + $0x10] sm:$0xff]
    %v72 = vld [vmem:[%s2 + $0x18] sm:$0xff]
    %v73 = vld [vmem:[%s2 + $0x20] sm:$0xff]
    %v74 = vld [vmem:[%s2 + $0x28] sm:$0xff]
    %v75 = vld [vmem:[%s2 + $0x30] sm:$0xff]
    %v76 = vld [vmem:[%s2 + $0x38] sm:$0xff]
    %78 = vset.pattern.permute.xlu0 0
    %79 = vperm.xlu0 %78, %v69
    %v80 = vpop.permute.xlu0 %79
    %83 = vset.pattern.permute.xlu0 0
    %84 = vperm.xlu0 %83, %v70
    %v85 = vpop.permute.xlu0 %84
    %88 = vset.pattern.permute.xlu0 0
    %89 = vperm.xlu0 %88, %v71
    %v90 = vpop.permute.xlu0 %89
    %93 = vset.pattern.permute.xlu0 0
    %94 = vperm.xlu0 %93, %v72
    %v95 = vpop.permute.xlu0 %94
    %98 = vset.pattern.permute.xlu0 0
    %99 = vperm.xlu0 %98, %v73
    %v100 = vpop.permute.xlu0 %99
    %103 = vset.pattern.permute.xlu0 0
    %104 = vperm.xlu0 %103, %v74
    %v105 = vpop.permute.xlu0 %104
    %108 = vset.pattern.permute.xlu0 0
    %109 = vperm.xlu0 %108, %v75
    %v110 = vpop.permute.xlu0 %109
    %113 = vset.pattern.permute.xlu0 0
    %114 = vperm.xlu0 %113, %v76
    %v115 = vpop.permute.xlu0 %114
    %vm117 = vcmask 244736
    %v119 = vsel %vm117, %v61, 0
    %v122 = vsel %vm117, %v62, 0
    %v125 = vsel %vm117, %v63, 0
    %v128 = vsel %vm117, %v64, 0
    %v131 = vsel %vm117, %v65, 0
    %v134 = vsel %vm117, %v66, 0
    %v137 = vsel %vm117, %v67, 0
    %v140 = vsel %vm117, %v68, 0
    %v143 = vsel %vm117, %v29, 0
    %v146 = vsel %vm117, %v30, 0
    %v149 = vsel %vm117, %v31, 0
    %v152 = vsel %vm117, %v32, 0
    %v155 = vsel %vm117, %v33, 0
    %v158 = vsel %vm117, %v34, 0
    %v161 = vsel %vm117, %v35, 0
    %v164 = vsel %vm117, %v36, 0
    %v167 = vsel %vm117, %v37, 0
    %v170 = vsel %vm117, %v38, 0
    %v173 = vsel %vm117, %v39, 0
    %v176 = vsel %vm117, %v40, 0
    %v179 = vsel %vm117, %v41, 0
    %v182 = vsel %vm117, %v42, 0
    %v185 = vsel %vm117, %v43, 0
    %v188 = vsel %vm117, %v44, 0
    %v191 = vsel %vm117, %v45, 0
    %v194 = vsel %vm117, %v46, 0
    %v197 = vsel %vm117, %v47, 0
    %v200 = vsel %vm117, %v48, 0
    %v203 = vsel %vm117, %v49, 0
    %v206 = vsel %vm117, %v50, 0
    %v209 = vsel %vm117, %v51, 0
    %v212 = vsel %vm117, %v52, 0
    %v215 = vsel %vm117, %v53, 0
    %v218 = vsel %vm117, %v54, 0
    %v221 = vsel %vm117, %v55, 0
    %v224 = vsel %vm117, %v56, 0
    %v227 = vsel %vm117, %v57, 0
    %v230 = vsel %vm117, %v58, 0
    %v233 = vsel %vm117, %v59, 0
    %v236 = vsel %vm117, %v60, 0
    %238 = vmatpush.xpose.msra.mxu0 %v188
    %239 = vmatpush.xpose.msra.mxu0 %v185
    %240 = vmatpush.xpose.msra.mxu0 %v182
    %241 = vmatpush.xpose.msra.mxu0 %v179
    %242 = vmatpush.xpose.msra.mxu0 %v176
    %243 = vmatpush.xpose.msra.mxu0 %v173
    %244 = vmatpush.xpose.msra.mxu0 %v170
    %245 = vmatpush.xpose.msra.mxu0 %v167
    %246 = vmatpush.xpose.msra.mxu0 %v164
    %247 = vmatpush.xpose.msra.mxu0 %v161
    %248 = vmatpush.xpose.msra.mxu0 %v158
    %249 = vmatpush.xpose.msra.mxu0 %v155
    %250 = vmatpush.xpose.msra.mxu0 %v152
    %251 = vmatpush.xpose.msra.mxu0 %v149
    %252 = vmatpush.xpose.msra.mxu0 %v146
    %253 = vmatpush.xpose.msra.mxu0 %v143
    %254 = vmatmul.f32.gmra.mxu0 %v119
    %v255 = vpop.f32.mrf.mxu0
    %v256 = vadd.f32 %v80, %v255
    %257 = vmatmul.f32.gmra.mxu0 %v122
    %v258 = vpop.f32.mrf.mxu0
    %v259 = vadd.f32 %v85, %v258
    %260 = vmatmul.f32.gmra.mxu0 %v125
    %v261 = vpop.f32.mrf.mxu0
    %v262 = vadd.f32 %v90, %v261
    %263 = vmatmul.f32.gmra.mxu0 %v128
    %v264 = vpop.f32.mrf.mxu0
    %v265 = vadd.f32 %v95, %v264
    %266 = vmatmul.f32.gmra.mxu0 %v131
    %v267 = vpop.f32.mrf.mxu0
    %v268 = vadd.f32 %v100, %v267
    %269 = vmatmul.f32.gmra.mxu0 %v134
    %v270 = vpop.f32.mrf.mxu0
    %v271 = vadd.f32 %v105, %v270
    %272 = vmatmul.f32.gmra.mxu0 %v137
    %v273 = vpop.f32.mrf.mxu0
    %v274 = vadd.f32 %v110, %v273
    %275 = vmatmul.f32.gmra.mxu0 %v140
    %v276 = vpop.f32.mrf.mxu0
    %v277 = vadd.f32 %v115, %v276
    %278 = vdwg.mxu0
    %279 = vmatpush.xpose.msra.mxu0 %v236
    %280 = vmatpush.xpose.msra.mxu0 %v233
    %281 = vmatpush.xpose.msra.mxu0 %v230
    %282 = vmatpush.xpose.msra.mxu0 %v227
    %283 = vmatpush.xpose.msra.mxu0 %v224
    %284 = vmatpush.xpose.msra.mxu0 %v221
    %285 = vmatpush.xpose.msra.mxu0 %v218
    %286 = vmatpush.xpose.msra.mxu0 %v215
    %287 = vmatpush.xpose.msra.mxu0 %v212
    %288 = vmatpush.xpose.msra.mxu0 %v209
    %289 = vmatpush.xpose.msra.mxu0 %v206
    %290 = vmatpush.xpose.msra.mxu0 %v203
    %291 = vmatpush.xpose.msra.mxu0 %v200
    %292 = vmatpush.xpose.msra.mxu0 %v197
    %293 = vmatpush.xpose.msra.mxu0 %v194
    %294 = vmatpush.xpose.msra.mxu0 %v191
    %295 = vmatmul.f32.gmra.mxu0 %v119
    %v296 = vpop.f32.mrf.mxu0
    %v297 = vadd.f32 %v80, %v296
    %298 = vmatmul.f32.gmra.mxu0 %v122
    %v299 = vpop.f32.mrf.mxu0
    %v300 = vadd.f32 %v85, %v299
    %301 = vmatmul.f32.gmra.mxu0 %v125
    %v302 = vpop.f32.mrf.mxu0
    %v303 = vadd.f32 %v90, %v302
    %304 = vmatmul.f32.gmra.mxu0 %v128
    %v305 = vpop.f32.mrf.mxu0
    %v306 = vadd.f32 %v95, %v305
    %307 = vmatmul.f32.gmra.mxu0 %v131
    %v308 = vpop.f32.mrf.mxu0
    %v309 = vadd.f32 %v100, %v308
    %310 = vmatmul.f32.gmra.mxu0 %v134
    %v311 = vpop.f32.mrf.mxu0
    %v312 = vadd.f32 %v105, %v311
    %313 = vmatmul.f32.gmra.mxu0 %v137
    %v314 = vpop.f32.mrf.mxu0
    %v315 = vadd.f32 %v110, %v314
    %316 = vmatmul.f32.gmra.mxu0 %v140
    %v317 = vpop.f32.mrf.mxu0
    %v318 = vadd.f32 %v115, %v317
    %319 = vdwg.mxu0
    %v320 = vmax.f32 %v256, 0.0
    %v321 = vmax.f32 %v297, 0.0
    %v322 = vmax.f32 %v259, 0.0
    %v323 = vmax.f32 %v300, 0.0
    %v324 = vmax.f32 %v262, 0.0
    %v325 = vmax.f32 %v303, 0.0
    %v326 = vmax.f32 %v265, 0.0
    %v327 = vmax.f32 %v306, 0.0
    %v328 = vmax.f32 %v268, 0.0
    %v329 = vmax.f32 %v309, 0.0
    %v330 = vmax.f32 %v271, 0.0
    %v331 = vmax.f32 %v312, 0.0
    %v332 = vmax.f32 %v274, 0.0
    %v333 = vmax.f32 %v315, 0.0
    %v334 = vmax.f32 %v277, 0.0
    %v335 = vmax.f32 %v318, 0.0
    %v336 = vld [vmem:[%s3] sm:$0xff]
    %v337 = vld [vmem:[%s3 + $0x8] sm:$0xff]
    %v338 = vld [vmem:[%s3 + $0x10] sm:$0xff]
    %v339 = vld [vmem:[%s3 + $0x18] sm:$0xff]
    %v340 = vld [vmem:[%s4] sm:$0xff]
    %v341 = vld [vmem:[%s4 + $0x8] sm:$0xff]
    %v342 = vld [vmem:[%s4 + $0x10] sm:$0xff]
    %v343 = vld [vmem:[%s4 + $0x18] sm:$0xff]
    %345 = vset.pattern.permute.xlu0 0
    %346 = vperm.xlu0 %345, %v340
    %v347 = vpop.permute.xlu0 %346
    %350 = vset.pattern.permute.xlu0 0
    %351 = vperm.xlu0 %350, %v341
    %v352 = vpop.permute.xlu0 %351
    %355 = vset.pattern.permute.xlu0 0
    %356 = vperm.xlu0 %355, %v342
    %v357 = vpop.permute.xlu0 %356
    %360 = vset.pattern.permute.xlu0 0
    %361 = vperm.xlu0 %360, %v343
    %v362 = vpop.permute.xlu0 %361
    %vm364 = vcmask 523264
    %v366 = vsel %vm364, %v336, 0
    %v369 = vsel %vm364, %v337, 0
    %v372 = vsel %vm364, %v338, 0
    %v375 = vsel %vm364, %v339, 0
    %377 = vmatpush.msra.mxu0 0.0
    %378 = vmatpush.msra.mxu0 0.0
    %379 = vmatpush.msra.mxu0 0.0
    %380 = vmatpush.msra.mxu0 0.0
    %381 = vmatpush.msra.mxu0 0.0
    %382 = vmatpush.msra.mxu0 0.0
    %383 = vmatpush.msra.mxu0 0.0
    %384 = vmatpush.msra.mxu0 0.0
    %385 = vmatpush.msra.mxu0 %v334
    %386 = vmatpush.msra.mxu0 %v332
    %387 = vmatpush.msra.mxu0 %v330
    %388 = vmatpush.msra.mxu0 %v328
    %389 = vmatpush.msra.mxu0 %v326
    %390 = vmatpush.msra.mxu0 %v324
    %391 = vmatpush.msra.mxu0 %v322
    %392 = vmatpush.msra.mxu0 %v320
    %393 = vmatmul.f32.gmra.mxu0 %v366
    %v394 = vpop.f32.mrf.mxu0
    %v395 = vadd.f32 %v347, %v394
    %396 = vmatmul.f32.gmra.mxu0 %v369
    %v397 = vpop.f32.mrf.mxu0
    %v398 = vadd.f32 %v352, %v397
    %399 = vmatmul.f32.gmra.mxu0 %v372
    %v400 = vpop.f32.mrf.mxu0
    %v401 = vadd.f32 %v357, %v400
    %402 = vmatmul.f32.gmra.mxu0 %v375
    %v403 = vpop.f32.mrf.mxu0
    %v404 = vadd.f32 %v362, %v403
    %405 = vdwg.mxu0
    %406 = vmatpush.msra.mxu0 0.0
    %407 = vmatpush.msra.mxu0 0.0
    %408 = vmatpush.msra.mxu0 0.0
    %409 = vmatpush.msra.mxu0 0.0
    %410 = vmatpush.msra.mxu0 0.0
    %411 = vmatpush.msra.mxu0 0.0
    %412 = vmatpush.msra.mxu0 0.0
    %413 = vmatpush.msra.mxu0 0.0
    %414 = vmatpush.msra.mxu0 %v335
    %415 = vmatpush.msra.mxu0 %v333
    %416 = vmatpush.msra.mxu0 %v331
    %417 = vmatpush.msra.mxu0 %v329
    %418 = vmatpush.msra.mxu0 %v327
    %419 = vmatpush.msra.mxu0 %v325
    %420 = vmatpush.msra.mxu0 %v323
    %421 = vmatpush.msra.mxu0 %v321
    %422 = vmatmul.f32.gmra.mxu0 %v366
    %v423 = vpop.f32.mrf.mxu0
    %v424 = vadd.f32 %v347, %v423
    %425 = vmatmul.f32.gmra.mxu0 %v369
    %v426 = vpop.f32.mrf.mxu0
    %v427 = vadd.f32 %v352, %v426
    %428 = vmatmul.f32.gmra.mxu0 %v372
    %v429 = vpop.f32.mrf.mxu0
    %v430 = vadd.f32 %v357, %v429
    %431 = vmatmul.f32.gmra.mxu0 %v375
    %v432 = vpop.f32.mrf.mxu0
    %v433 = vadd.f32 %v362, %v432
    %434 = vdwg.mxu0
    %v435 = vmax.f32 %v395, 0.0
    %v436 = vmax.f32 %v424, 0.0
    %v437 = vmax.f32 %v398, 0.0
    %v438 = vmax.f32 %v427, 0.0
    %v439 = vmax.f32 %v401, 0.0
    %v440 = vmax.f32 %v430, 0.0
    %v441 = vmax.f32 %v404, 0.0
    %v442 = vmax.f32 %v433, 0.0
    %v443 = vld [vmem:[%s5] sm:$0xff]
    %v444 = vld [vmem:[%s5 + $0x8] sm:$0xff]
    %v445 = vld [vmem:[%s5 + $0x10] sm:$0xff]
    %v446 = vld [vmem:[%s5 + $0x18] sm:$0xff]
    %448 = vset.pattern.permute.xlu0 0
    %449 = vperm.xlu0 %448, %v443
    %v450 = vpop.permute.xlu0 %449
    %453 = vset.pattern.permute.xlu0 0
    %454 = vperm.xlu0 %453, %v444
    %v455 = vpop.permute.xlu0 %454
    %458 = vset.pattern.permute.xlu0 0
    %459 = vperm.xlu0 %458, %v445
    %v460 = vpop.permute.xlu0 %459
    %463 = vset.pattern.permute.xlu0 0
    %464 = vperm.xlu0 %463, %v446
    %v465 = vpop.permute.xlu0 %464
    %v467 = vmul.f32 %v450, %v435
    %v468 = vmul.f32 %v450, %v436
    %v469 = vmul.f32 %v455, %v437
    %v470 = vmul.f32 %v455, %v438
    %v471 = vmul.f32 %v460, %v439
    %v472 = vmul.f32 %v460, %v440
    %v473 = vmul.f32 %v465, %v441
    %v474 = vmul.f32 %v465, %v442
    %v475 = vadd.f32 %v467, %v469
    %v476 = vadd.f32 %v475, %v471
    %v477 = vadd.f32 %v476, %v473
    %v478 = vrot.slane %v477, 4
    %v479 = vadd.f32 %v477, %v478
    %v480 = vrot.slane %v479, 2
    %v481 = vadd.f32 %v479, %v480
    %v482 = vrot.slane %v481, 1
    %v483 = vadd.f32 %v481, %v482
    %v484 = vadd.f32 %v468, %v470
    %v485 = vadd.f32 %v484, %v472
    %v486 = vadd.f32 %v485, %v474
    %v487 = vrot.slane %v486, 4
    %v488 = vadd.f32 %v486, %v487
    %v489 = vrot.slane %v488, 2
    %v490 = vadd.f32 %v488, %v489
    %v491 = vrot.slane %v490, 1
    %v492 = vadd.f32 %v490, %v491
    %v493 = vld [vmem:[#allocation2] sm:$0x1]
    %495 = vset.pattern.permute.xlu0 0
    %496 = vperm.xlu0 %495, %v493
    %v497 = vpop.permute.xlu0 %496
    %v499 = vperm.slane %v497, 0
    %v500 = vadd.f32 %v483, %v499
    %v501 = vadd.f32 %v492, %v499
    %v502 = vsub.f32 0.0, %v500
    %v503 = vsub.f32 0.0, %v501
    %v504 = vmul.f32 %v502, 1.442695
    %v505 = vpow.pop %v504
    %v506 = vmul.f32 %v503, 1.442695
    %v507 = vpow.pop %v506
    %v508 = vadd.f32 %v505, 1.0
    %v509 = vadd.f32 %v507, 1.0
    %v510 = vrcp.pop %v508
    %v511 = vmul.f32 %v508, %v510
    %v512 = vsub.f32 1.0, %v511
    %v513 = vmul.f32 %v510, %v512
    %v514 = vadd.f32 %v510, %v513
    %vm515 = vweird.f32 %v508
    %vm516 = vweird.f32 %v510
    %vm517 = vmor %vm515, %vm516
    %v518 = vsel %vm517, %v510, %v514
    %v519 = vand.u32 2147483647, %v508
    %vm520 = vcmp.eq.f32.partialorder %v519, 8.507059e+37
    %v521 = vand.u32 %v508, 2147483648
    %v522 = vor.u32 1.1754944e-38, %v521
    %v523 = vsel %vm520, %v522, %v518
    %v524 = vmul.f32 1.0, %v523
    %v525 = vrcp.pop %v509
    %v526 = vmul.f32 %v509, %v525
    %v527 = vsub.f32 1.0, %v526
    %v528 = vmul.f32 %v525, %v527
    %v529 = vadd.f32 %v525, %v528
    %vm530 = vweird.f32 %v509
    %vm531 = vweird.f32 %v525
    %vm532 = vmor %vm530, %vm531
    %v533 = vsel %vm532, %v525, %v529
    %v534 = vand.u32 2147483647, %v509
    %vm535 = vcmp.eq.f32.partialorder %v534, 8.507059e+37
    %v536 = vand.u32 %v509, 2147483648
    %v537 = vor.u32 1.1754944e-38, %v536
    %v538 = vsel %vm535, %v537, %v533
    %v539 = vmul.f32 1.0, %v538
    %v542 = vrot.slane %v539, 7
    %vm543 = vcmask 1040384
    %v544 = vsel %vm543, %v524, %v542
    %v546 = vlaneseq
    %vm547 = vcmp.ge.s32.totalorder %v546, 0
    %vm548 = vcmp.lt.s32.totalorder %v546, 256
    %vm549 = vmand %vm547, %vm548
    %550 = vst.msk [vmem:[#allocation3] sm:$0x3] %vm549, %v544
    // Predicated region
    $region30: #{tpu_custom_call.1} parent=1 // pred_check
      _
    $region31: #{tpu_custom_call.1} parent=1 // pred_check_branch
      %552 = sbr.rel (0) target = $region33
    $region32: #{tpu_custom_call.1} parent=1 // pred_region
      %554 = vsyncadd [#allocation4], 16
      %s556 = sshll.u32 [#allocation3], 4
      %s557 = int_to_ptr.vmem [resolvable:$true] %s556
      %s558 = sshll.u32 %s7, 4
      %s559 = int_to_ptr.hbm [resolvable:$true] %s558
      %561 = dma.vmem_to_hbm [thread:$0]  %s557, 16, %s559, [#allocation4]
    $region33: #{tpu_custom_call.1} parent=1 // pred_fallthru
      _
    // Predicated region
    $region34: #{tpu_custom_call.1} parent=1 // pred_check
      _
    $region35: #{tpu_custom_call.1} parent=1 // pred_check_branch
      %563 = sbr.rel (0) target = $region37
    $region36: #{tpu_custom_call.1} parent=1 // pred_region
      %565 = dma.done [#allocation4], 32
    $region37: #{tpu_custom_call.1} parent=1 // pred_fallthru
      _
    %566 = vsyncpa [#allocation4], 1

</llo_original>
